<compile_context>
chip_gen: v5e
topology: v5e:2x2
jax: 0.10.0
libtpu: 0.0.40
codegen_flags: <defaults>
</compile_context>

<pallas_src>
import jax
import jax.numpy as jnp
from jax.experimental import pallas as pl
from jax.experimental.pallas import tpu as pltpu


def _normalize_kernel(x_ref, m_ref, s_ref, o_ref):
    # x_ref: (row_tile, col_tile); m_ref / s_ref: (row_tile, 1) f32.
    # (row_tile, 1) broadcasts over the lane axis; stats are f32 so the math is
    # done in f32 regardless of the input dtype, then cast back on store.
    o_ref[...] = ((x_ref[...] - m_ref[...]) * s_ref[...]).astype(o_ref.dtype)


def _cdiv(a, b):
    return -(-a // b)


def _round_down(x, m):
    return (x // m) * m


def _pick_col_tile(L, max_col):
    """Largest multiple of 128 <= max_col, preferring an exact divisor of L so
    all output stores stay unmasked / lane-dense."""
    c = max(128, _round_down(max_col, 128))
    d = c
    while d >= 128:
        if L % d == 0:
            return d
        d -= 128
    return c


def _vmem_info():
    """Returns (scoped VMEM budget in bytes, likely-two-TensorCore chip)."""
    try:
        cap = int(pltpu.get_tpu_info().vmem_capacity_bytes)
    except Exception:  # fallback if the query is unavailable
        cap = 128 << 20
    if cap <= (64 << 20):            # v7x-class: 64 MiB VMEM per TC, 2 TCs/chip
        return min(cap, 48 << 20), True
    return 100 << 20, False          # v5e / v6e: 128 MiB VMEM, single TC


def normalize_layer(x, means, sds, *, target_block_bytes=None):
    """Pallas equivalent of NormalizeLayer.forward: (x - mean[c]) / sd[c].

    x:     (B, C, H, W) array (NCHW, as in PyTorch)
    means: (C,) channel means
    sds:   (C,) channel standard deviations
    """
    B, C, H, W = x.shape
    R, L = B * C, H * W
    dt = x.dtype
    itemsize = jnp.dtype(dt).itemsize
    sub = max(8, 32 // itemsize)     # sublane multiple: f32->8, bf16->16, i8->32

    vmem_budget, two_tc = _vmem_info()
    if target_block_bytes is None:
        # Mem-bound kernel: big blocks, but respect v7x's smaller VMEM.
        target_block_bytes = (6 << 20) if two_tc else (8 << 20)
    # Keep 2x(in + out) double-buffered blocks comfortably inside the budget.
    target_block_bytes = min(target_block_bytes, (vmem_budget - (8 << 20)) // 4)

    # ---- column tile: full width (one contiguous HBM DMA per row group, no
    # column grid axis) whenever a minimal sublane group fits the budget.
    if sub * L * itemsize <= target_block_bytes:
        col_tile = L
    else:
        col_tile = min(L, _pick_col_tile(L, target_block_bytes // (sub * itemsize)))
    n_col = _cdiv(L, col_tile)

    # ---- row tile from the remaining budget.
    rows_budget = max(1, target_block_bytes // (col_tile * itemsize))
    row_tile = max(sub, _round_down(rows_budget, sub))
    if row_tile >= R:
        row_tile = R                 # full dim is always a legal block size
    n_row = _cdiv(R, row_tile)

    # ---- v7x only: balance the parallel row axis across the two TensorCores.
    if two_tc:
        if n_row * n_col == 1 and R >= 2 * sub:
            row_tile = max(sub, _round_down(R // 2, sub))
            n_row = _cdiv(R, row_tile)
        elif n_row > 1 and (n_row % 2 == 1):
            cand = _round_down(_cdiv(R, n_row + 1), sub)
            if cand >= sub and _cdiv(R, cand) % 2 == 0:
                row_tile, n_row = cand, _cdiv(R, cand)

    # ---- per-row mean / reciprocal-sd columns: row r = b*C + c -> channel c.
    # NOTE: multiplying by a precomputed f32 reciprocal (instead of dividing)
    # differs from PyTorch's (x - mean) / sd by at most ~1-2 ulp.
    m_rows = jnp.tile(means.astype(jnp.float32), B).reshape(R, 1)
    s_rows = jnp.tile(1.0 / sds.astype(jnp.float32), B).reshape(R, 1)

    x2 = x.reshape(R, L)

    # ---- scoped VMEM: double-buffered in/out blocks + double-buffered
    # (lane/sublane-padded f32) stat tiles, plus headroom.
    block_bytes = row_tile * col_tile * itemsize
    stat_block_bytes = _cdiv(row_tile, 8) * 8 * 128 * 4
    vmem_needed = 4 * block_bytes + 4 * stat_block_bytes + (4 << 20)
    vmem_limit = int(min(vmem_budget, max(32 << 20, vmem_needed)))

    cost = pl.CostEstimate(
        flops=2 * R * L,
        transcendentals=0,
        bytes_accessed=2 * R * L * itemsize + 2 * R * 4,
    )

    out = pl.pallas_call(
        _normalize_kernel,
        out_shape=jax.ShapeDtypeStruct((R, L), dt),
        grid=(n_row, n_col),
        in_specs=[
            pl.BlockSpec((row_tile, col_tile), lambda i, j: (i, j)),
            pl.BlockSpec((row_tile, 1), lambda i, j: (i, 0)),   # per-row-tile mean
            pl.BlockSpec((row_tile, 1), lambda i, j: (i, 0)),   # per-row-tile 1/sd
        ],
        out_specs=pl.BlockSpec((row_tile, col_tile), lambda i, j: (i, j)),
        compiler_params=pltpu.CompilerParams(
            dimension_semantics=("parallel", "parallel"),
            vmem_limit_bytes=vmem_limit,
        ),
        cost_estimate=cost,
    )(x2, m_rows, s_rows)
    return out.reshape(B, C, H, W)


if __name__ == "__main__":
    key = jax.random.PRNGKey(0)
    B, C, H, W = 2, 4, 16, 16

    # Deterministic "dataset statistics" (module __init__ params).
    means = jnp.array([0.485, 0.456, 0.406, 0.5], dtype=jnp.float32)
    sds = jnp.array([0.229, 0.224, 0.225, 0.25], dtype=jnp.float32)

    x = jax.random.uniform(key, (B, C, H, W), dtype=jnp.float32)

    out = jax.block_until_ready(normalize_layer(x, means, sds))

    # Reference check (pure JAX, mirrors the PyTorch broadcast semantics).
    ref = (x - means[None, :, None, None]) / sds[None, :, None, None]
    assert out.shape == (B, C, H, W)
    assert jnp.allclose(out, ref, atol=1e-5, rtol=1e-6)

    print("KERNEL_OK")
</pallas_src>

<mosaic_0001>
module attributes {stable_mosaic.version = 11 : i64} {
  func.func @_normalize_kernel(%arg0: i32, %arg1: i32, %arg2: memref<8x256xf32, #tpu.memory_space<vmem>>, %arg3: memref<8x1xf32, #tpu.memory_space<vmem>>, %arg4: memref<8x1xf32, #tpu.memory_space<vmem>>, %arg5: memref<8x256xf32, #tpu.memory_space<vmem>>) attributes {dimension_semantics = [#tpu.dimension_semantics<parallel>, #tpu.dimension_semantics<parallel>], iteration_bounds = array<i64: 1, 1>, scalar_prefetch = 0 : i64, scratch_operands = 0 : i64, tpu.core_type = #tpu.core_type<tc>, window_params = [{transform_indices = @transform_0, window_bounds = array<i64: 8, 256>}, {transform_indices = @transform_1, window_bounds = array<i64: 8, 1>}, {transform_indices = @transform_2, window_bounds = array<i64: 8, 1>}, {transform_indices = @transform_3, window_bounds = array<i64: 8, 256>}]} {
    %c0 = arith.constant 0 : index
    %c0_0 = arith.constant 0 : index
    %0 = vector.load %arg2[%c0, %c0_0] : memref<8x256xf32, #tpu.memory_space<vmem>>, vector<8x256xf32>
    %c0_1 = arith.constant 0 : index
    %c0_2 = arith.constant 0 : index
    %1 = vector.load %arg3[%c0_1, %c0_2] : memref<8x1xf32, #tpu.memory_space<vmem>>, vector<8x1xf32>
    %2 = vector.broadcast %1 : vector<8x1xf32> to vector<8x256xf32>
    %3 = arith.subf %0, %2 : vector<8x256xf32>
    %c0_3 = arith.constant 0 : index
    %c0_4 = arith.constant 0 : index
    %4 = vector.load %arg4[%c0_3, %c0_4] : memref<8x1xf32, #tpu.memory_space<vmem>>, vector<8x1xf32>
    %5 = vector.broadcast %4 : vector<8x1xf32> to vector<8x256xf32>
    %6 = arith.mulf %3, %5 : vector<8x256xf32>
    %c0_5 = arith.constant 0 : index
    %c0_6 = arith.constant 0 : index
    %7 = vector.load %arg5[%c0_5, %c0_6] : memref<8x256xf32, #tpu.memory_space<vmem>>, vector<8x256xf32>
    tpu.vector_store %arg5[%c0_5, %c0_6], %6 {strides = array<i32>} : memref<8x256xf32, #tpu.memory_space<vmem>>, vector<8x256xf32>,
    return
  }
  func.func @transform_0(%arg0: i32, %arg1: i32) -> (i32, i32) {
    %c0_i32 = arith.constant 0 : i32
    return %arg0, %arg1 : i32, i32
  }
  func.func @transform_1(%arg0: i32, %arg1: i32) -> (i32, i32) {
    %c0_i32 = arith.constant 0 : i32
    %c0_i32_0 = arith.constant 0 : i32
    return %arg0, %c0_i32 : i32, i32
  }
  func.func @transform_2(%arg0: i32, %arg1: i32) -> (i32, i32) {
    %c0_i32 = arith.constant 0 : i32
    %c0_i32_0 = arith.constant 0 : i32
    return %arg0, %c0_i32 : i32, i32
  }
  func.func @transform_3(%arg0: i32, %arg1: i32) -> (i32, i32) {
    %c0_i32 = arith.constant 0 : i32
    return %arg0, %arg1 : i32, i32
  }
}

</mosaic_0001>

<llo_original>
// kernel: tpu_custom_call.1
$region0: #{tpu_custom_call.1}
  #allocation0 [shape = 'u32[]', space=smem, size = 0x4, offset = 0x4, fixed_abs, tag = 'smem constant byte address 0x4 - core index']
  #allocation1 [shape = 'u32[72,128]{1,0:T(1,128)}', space=vmem, size = 0x9000, scoped, tag = 'internal scratch']
  %s0 = inlined_call_operand.vmem [shape: f32[8,256], index: 0, kind: input, shape index: {}]
  %s1 = inlined_call_operand.vmem [shape: f32[8,1], index: 1, kind: input, shape index: {}]
  %s2 = inlined_call_operand.vmem [shape: f32[8,1], index: 2, kind: input, shape index: {}]
  %s3 = inlined_call_operand.hbm [shape: f32[8,256], index: 3, kind: output, shape index: {}]
  %s4 = sld [smem:[#allocation0]]
  $region22: #{tpu_custom_call.1} parent=0
    _
  %s6 = ssub.s32 1, %s4
  %s7 = scalar_select 0, %s6, %s4
  $region1: #{tpu_custom_call.1} parent=0
    #allocation2 [shape = 'u8[8192]{0}', space=vmem, size = 0x2000, scoped, tag = 'output window, operand 0, single buffered']
    #allocation3 [shape = 's32[1]{0}', space=sflag, size = 0x4, scoped, tag = 'scoped memory for tpu_custom_call.1']
    %8 = vsyncpa [#allocation3], 0
    // Predicated region
    $region2: #{tpu_custom_call.1} parent=1 // pred_check
      _
    $region3: #{tpu_custom_call.1} parent=1 // pred_check_branch
      %10 = sbr.rel (0) target = $region5
    $region4: #{tpu_custom_call.1} parent=1 // pred_region
      _
    $region5: #{tpu_custom_call.1} parent=1 // pred_fallthru
      _
    // Predicated region
    $region6: #{tpu_custom_call.1} parent=1 // pred_check
      _
    $region7: #{tpu_custom_call.1} parent=1 // pred_check_branch
      %12 = sbr.rel (0) target = $region9
    $region8: #{tpu_custom_call.1} parent=1 // pred_region
      _
    $region9: #{tpu_custom_call.1} parent=1 // pred_fallthru
      _
    // Predicated region
    $region10: #{tpu_custom_call.1} parent=1 // pred_check
      _
    $region11: #{tpu_custom_call.1} parent=1 // pred_check_branch
      %14 = sbr.rel (0) target = $region13
    $region12: #{tpu_custom_call.1} parent=1 // pred_region
      _
    $region13: #{tpu_custom_call.1} parent=1 // pred_fallthru
      _
    %v15 = vld [vmem:[%s0] sm:$0xff]
    %v16 = vld [vmem:[%s0 + $0x8] sm:$0xff]
    %v17 = vld [vmem:[%s1] sm:$0xff]
    %19 = vset.pattern.permute.xlu0 0
    %20 = vperm.xlu0 %19, %v17
    %v21 = vpop.permute.xlu0 %20
    %v23 = vsub.f32 %v15, %v21
    %v24 = vsub.f32 %v16, %v21
    %v25 = vld [vmem:[%s2] sm:$0xff]
    %27 = vset.pattern.permute.xlu0 0
    %28 = vperm.xlu0 %27, %v25
    %v29 = vpop.permute.xlu0 %28
    %v31 = vmul.f32 %v23, %v29
    %v32 = vmul.f32 %v24, %v29
    %33 = vst [vmem:[#allocation2] sm:$0xff] %v31
    %34 = vst [vmem:[#allocation2 + $0x8] sm:$0xff] %v32
    // Predicated region
    $region14: #{tpu_custom_call.1} parent=1 // pred_check
      _
    $region15: #{tpu_custom_call.1} parent=1 // pred_check_branch
      %36 = sbr.rel (0) target = $region17
    $region16: #{tpu_custom_call.1} parent=1 // pred_region
      %38 = vsyncadd [#allocation3], 0
      %s40 = sshll.u32 [#allocation2], 4
      %s41 = int_to_ptr.vmem [resolvable:$true] %s40
      %s42 = sshll.u32 %s3, 4
      %s43 = int_to_ptr.hbm [resolvable:$true] %s42
      %45 = dma.vmem_to_hbm [thread:$0]  %s41, 256, %s43, [#allocation3]
    $region17: #{tpu_custom_call.1} parent=1 // pred_fallthru
      _
    // Predicated region
    $region18: #{tpu_custom_call.1} parent=1 // pred_check
      _
    $region19: #{tpu_custom_call.1} parent=1 // pred_check_branch
      %47 = sbr.rel (0) target = $region21
    $region20: #{tpu_custom_call.1} parent=1 // pred_region
      %49 = dma.done [#allocation3], 256
    $region21: #{tpu_custom_call.1} parent=1 // pred_fallthru
      _
    %50 = vsyncpa [#allocation3], 1

</llo_original>
